<compile_context>
chip_gen: v6e
topology: v6e:2x2x1
jax: 0.10.0
libtpu: 0.0.40
codegen_flags: <defaults>
</compile_context>

<pallas_src>
import functools

import jax
import jax.numpy as jnp
from jax.experimental import pallas as pl
from jax.experimental.pallas import tpu as pltpu


def _round_up(x, m):
    return ((x + m - 1) // m) * m


def _vmem_limit_bytes():
    """Safe scoped-VMEM limit: ~75% of physical (v7x 64MiB -> 48, v5e/v6e 128 -> 96)."""
    try:
        cap = pltpu.get_tpu_info().vmem_capacity_bytes
    except Exception:
        cap = 64 << 20
    return int(min(cap * 3 // 4, 96 << 20))


def _plan_tiles(n, heads, out_channels, vmem_limit):
    """Pick a target-row tile (multiple of 128) and padded node count from a VMEM budget."""
    lane_n = _round_up(n, 128)
    budget = vmem_limit - (8 << 20)                      # headroom for compiler scratch
    # Resident in kernel 2 (x2 = double-buffered pipeline stages):
    fixed = 2 * heads * lane_n * out_channels * 2        # hh (bf16, full, resident)
    fixed += 2 * heads * lane_n * 4                      # e_src^T (f32, full)
    per_row = lane_n * (2 * 2 + 2 * 4)                   # mbias tile (bf16 x2) + f32 score temps
    per_row += 2 * (heads + 2 * heads * out_channels) * 4
    avail = max(budget - fixed, 128 * per_row)
    tm = max(128, min(512, (avail // per_row) // 128 * 128))
    tm = min(tm, _round_up(n, 128))
    if n > 128:
        tm = min(tm, _round_up(pl.cdiv(n, 2), 128))      # >= 2 grid steps (v7x megacore)
    npad = _round_up(n, tm)
    return tm, npad


# --------------------------------------------------------------------------
# Kernel 1: single fused projection matmul.
# --------------------------------------------------------------------------
def gat_project_kernel(x_ref, wf_ref, hh_ref, e_ref, *, hc):
    """y = x @ [W | att_proj];  hh <- y[:, :H*C] (bf16),  e <- y[:, H*C:] (f32, src|dst)."""
    y = jnp.dot(x_ref[...], wf_ref[...], preferred_element_type=jnp.float32)
    hh_ref[...] = y[:, :hc].astype(hh_ref.dtype)
    e_ref[...] = y[:, hc:]


def gat_project(x, w_fused, *, heads, out_channels, tm, vmem_limit):
    npad, f_in = x.shape
    hc = heads * out_channels
    kernel = functools.partial(gat_project_kernel, hc=hc)
    return pl.pallas_call(
        kernel,
        out_shape=(jax.ShapeDtypeStruct((npad, hc), jnp.bfloat16),
                   jax.ShapeDtypeStruct((npad, 2 * heads), jnp.float32)),
        grid=(npad // tm,),
        in_specs=[
            pl.BlockSpec((tm, f_in), lambda i: (i, 0)),               # x tile
            pl.BlockSpec((f_in, hc + 2 * heads), lambda i: (0, 0)),   # fused weight (full)
        ],
        out_specs=(pl.BlockSpec((tm, hc), lambda i: (i, 0)),
                   pl.BlockSpec((tm, 2 * heads), lambda i: (i, 0))),
        compiler_params=pltpu.CompilerParams(
            dimension_semantics=("parallel",),
            vmem_limit_bytes=vmem_limit),
    )(x, w_fused)


# --------------------------------------------------------------------------
# Kernel 2: attention softmax + aggregation, tiled over target rows.
# --------------------------------------------------------------------------
def gat_attn_kernel(hh_ref, esrc_ref, edst_ref, mbias_ref, bias_ref, out_ref,
                    *, heads, out_channels, concat, apply_elu,
                    negative_slope=0.2):
    """
    hh_ref:    [H, Npad, C]  bf16  head-major source features (full, resident)
    esrc_ref:  [H, Npad]     f32   a_src . h_j per head (full)
    edst_ref:  [TM, H]       f32   a_dst . h_i for this target tile
    mbias_ref: [TM, Npad]    bf16  additive mask (0 on edge / self-loop, -1e9 off)
    bias_ref:  [1, out_dim]  f32
    out_ref:   [TM, out_dim] f32
    """
    head_out = []
    acc = None
    for h in range(heads):
        hh_h = hh_ref[h]                            # [Npad, C] bf16 (leading-axis view)
        e_src = esrc_ref[h:h + 1, :]                # [1, Npad]
        e_dst = edst_ref[:, h:h + 1]                # [TM, 1]

        s = e_dst + e_src                           # [TM, Npad]
        s = jnp.maximum(s, negative_slope * s)      # LeakyReLU (slope < 1)
        s = s + mbias_ref[...]                      # bf16 bias, promoted inline to f32
        s = s - jnp.max(s, axis=-1, keepdims=True)
        p = jnp.exp(s)
        alpha = p * pl.reciprocal(jnp.sum(p, axis=-1, keepdims=True), approx=True)

        agg = jnp.dot(alpha.astype(jnp.bfloat16), hh_h,
                      preferred_element_type=jnp.float32)            # [TM, C]
        if concat:
            head_out.append(agg)
        else:
            acc = agg if acc is None else acc + agg

    if concat:
        o = jnp.concatenate(head_out, axis=-1) + bias_ref[...]       # [TM, H*C]
    else:
        o = acc * jnp.float32(1.0 / heads) + bias_ref[...]           # [TM, C]
    if apply_elu:
        o = jnp.where(o > 0, o, jnp.exp(jnp.minimum(o, 0.0)) - 1.0)
    out_ref[...] = o.astype(out_ref.dtype)                           # one lane-dense store


def gat_attention(hh_hm, e_src_t, e_dst, mbias, bias, *, heads, out_channels,
                  concat, apply_elu, tm, vmem_limit):
    npad = hh_hm.shape[1]
    out_dim = heads * out_channels if concat else out_channels
    kernel = functools.partial(gat_attn_kernel, heads=heads,
                               out_channels=out_channels, concat=concat,
                               apply_elu=apply_elu)
    cost = pl.CostEstimate(
        flops=int(2 * heads * npad * npad * out_channels + 8 * heads * npad * npad),
        transcendentals=int(heads * npad * npad),
        bytes_accessed=int(mbias.size * mbias.dtype.itemsize + hh_hm.size * 2
                           + npad * out_dim * 4),
    )
    return pl.pallas_call(
        kernel,
        out_shape=jax.ShapeDtypeStruct((npad, out_dim), jnp.float32),
        grid=(npad // tm,),
        in_specs=[
            pl.BlockSpec((heads, npad, out_channels), lambda i: (0, 0, 0)),  # hh (full)
            pl.BlockSpec((heads, npad), lambda i: (0, 0)),                   # e_src^T (full)
            pl.BlockSpec((tm, heads), lambda i: (i, 0)),                     # e_dst tile
            pl.BlockSpec((tm, npad), lambda i: (i, 0)),                      # mask bias tile
            pl.BlockSpec((1, out_dim), lambda i: (0, 0)),                    # bias (full)
        ],
        out_specs=pl.BlockSpec((tm, out_dim), lambda i: (i, 0)),
        compiler_params=pltpu.CompilerParams(
            dimension_semantics=("parallel",),
            vmem_limit_bytes=vmem_limit),
        cost_estimate=cost,
    )(hh_hm, e_src_t, e_dst, mbias, bias)


# --------------------------------------------------------------------------
# Two-layer GAT matching the PyTorch module's forward pass.
# --------------------------------------------------------------------------
class GATPallas:

    def __init__(self, in_channels, out_channels, heads=1, *, key):
        self.heads = heads
        self.out_channels = out_channels
        hc = heads * out_channels
        k = jax.random.split(key, 6)
        scale1 = 1.0 / jnp.sqrt(jnp.float32(in_channels))
        scale2 = 1.0 / jnp.sqrt(jnp.float32(hc))

        # conv1: in_channels -> out_channels, heads, concat=True
        self.w1 = jax.random.normal(k[0], (in_channels, hc), jnp.float32) * scale1
        self.att_src1 = jax.random.normal(k[1], (heads, out_channels), jnp.float32) * scale1
        self.att_dst1 = jax.random.normal(k[2], (heads, out_channels), jnp.float32) * scale1
        self.bias1 = jnp.zeros((1, hc), jnp.float32)

        # conv2: out_channels*heads -> out_channels, heads, concat=False
        self.w2 = jax.random.normal(k[3], (hc, hc), jnp.float32) * scale2
        self.att_src2 = jax.random.normal(k[4], (heads, out_channels), jnp.float32) * scale2
        self.att_dst2 = jax.random.normal(k[5], (heads, out_channels), jnp.float32) * scale2
        self.bias2 = jnp.zeros((1, out_channels), jnp.float32)

        # One fused projection operand per layer: [W | a_src-proj | a_dst-proj], so
        # kernel 1 does a single MXU matmul (columns: H*C | H src cols | H dst cols).
        def fuse(w, a_src, a_dst, f_in):
            wr = w.reshape(f_in, heads, out_channels)
            p_src = jnp.einsum('fhc,hc->fh', wr, a_src)
            p_dst = jnp.einsum('fhc,hc->fh', wr, a_dst)
            return jnp.concatenate([w, p_src, p_dst], axis=-1)   # [F_in, H*C + 2H]

        self.wf1 = fuse(self.w1, self.att_src1, self.att_dst1, in_channels)
        self.wf2 = fuse(self.w2, self.att_src2, self.att_dst2, hc)

    def build_mask_bias(self, edge_index, npad):
        """Additive softmax mask (bf16): 0 on edge j->i and on the diagonal
        (add_self_loops=True; also keeps padded rows finite), -1e9 elsewhere.
        For a static graph, cache this result across forward calls."""
        src, dst = edge_index[0], edge_index[1]
        mbias = jnp.full((npad, npad), -1e9, jnp.float32)
        mbias = mbias.at[dst, src].set(0.0)
        idx = jnp.arange(npad)
        mbias = mbias.at[idx, idx].set(0.0)
        return mbias.astype(jnp.bfloat16)

    def __call__(self, x, edge_index, edge_weights):
        # GATConv(edge_dim=None) silently ignores edge_attr -> unused.
        del edge_weights
        n = x.shape[0]
        H, C = self.heads, self.out_channels

        vmem_limit = _vmem_limit_bytes()
        tm, npad = _plan_tiles(n, H, C, vmem_limit)

        x = jnp.pad(x, ((0, npad - n), (0, 0)))
        mbias = self.build_mask_bias(edge_index, npad)     # shared by both layers

        def layer(h_in, wf, bias, concat, apply_elu):
            hh, e = gat_project(h_in, wf, heads=H, out_channels=C,
                                tm=tm, vmem_limit=vmem_limit)
            # Layout plumbing (tiny XLA ops): head-major hh, per-head e rows.
            hh_hm = jnp.transpose(hh.reshape(npad, H, C), (1, 0, 2))   # [H, Npad, C]
            e_src_t = jnp.transpose(e[:, :H])                          # [H, Npad]
            e_dst = e[:, H:]                                           # [Npad, H]
            return gat_attention(hh_hm, e_src_t, e_dst, mbias, bias,
                                 heads=H, out_channels=C, concat=concat,
                                 apply_elu=apply_elu, tm=tm,
                                 vmem_limit=vmem_limit)

        h1 = layer(x, self.wf1, self.bias1, concat=True, apply_elu=True)      # conv1 + F.elu
        out = layer(h1, self.wf2, self.bias2, concat=False, apply_elu=False)  # conv2
        return out[:n]


if __name__ == "__main__":
    key = jax.random.PRNGKey(0)
    k_x, k_e, k_w, k_p = jax.random.split(key, 4)

    num_nodes = 16
    in_channels = 8
    out_channels = 8
    heads = 2
    num_edges = 32

    x = jax.random.normal(k_x, (num_nodes, in_channels), jnp.float32)
    edge_index = jax.random.randint(k_e, (2, num_edges), 0, num_nodes, jnp.int32)
    edge_weights = jax.random.uniform(k_w, (num_edges,), jnp.float32)

    model = GATPallas(in_channels, out_channels, heads=heads, key=k_p)
    out = model(x, edge_index, edge_weights)
    out = jax.block_until_ready(out)

    assert out.shape == (num_nodes, out_channels), out.shape
    assert bool(jnp.all(jnp.isfinite(out)))
    print("KERNEL_OK")
</pallas_src>

<mosaic_0001>
module attributes {stable_mosaic.version = 11 : i64} {
  func.func @gat_project_kernel(%arg0: i32, %arg1: memref<128x8xf32, #tpu.memory_space<vmem>>, %arg2: memref<8x20xf32, #tpu.memory_space<vmem>>, %arg3: memref<128x16xbf16, #tpu.memory_space<vmem>>, %arg4: memref<128x4xf32, #tpu.memory_space<vmem>>) attributes {dimension_semantics = [#tpu.dimension_semantics<parallel>], iteration_bounds = array<i64: 1>, scalar_prefetch = 0 : i64, scratch_operands = 0 : i64, tpu.core_type = #tpu.core_type<tc>, window_params = [{transform_indices = @transform_0, window_bounds = array<i64: 128, 8>}, {pipeline_mode = #tpu.pipeline_mode<synchronous>, transform_indices = @transform_1, window_bounds = array<i64: 8, 20>}, {transform_indices = @transform_2, window_bounds = array<i64: 128, 16>}, {transform_indices = @transform_3, window_bounds = array<i64: 128, 4>}]} {
    %c0 = arith.constant 0 : index
    %c0_0 = arith.constant 0 : index
    %0 = vector.load %arg1[%c0, %c0_0] : memref<128x8xf32, #tpu.memory_space<vmem>>, vector<128x8xf32>
    %c0_1 = arith.constant 0 : index
    %c0_2 = arith.constant 0 : index
    %1 = vector.load %arg2[%c0_1, %c0_2] : memref<8x20xf32, #tpu.memory_space<vmem>>, vector<8x20xf32>
    %cst = arith.constant dense<0.000000e+00> : vector<128x20xf32>
    %2 = tpu.matmul %0, %1, %cst {dimension_numbers = #tpu.dot_dimension_numbers<[1], [0], [0], [1], [0, 0, 1, 1], [], []>} : vector<128x8xf32>, vector<8x20xf32>, vector<128x20xf32> -> vector<128x20xf32>
    %3 = vector.extract_strided_slice %2 {offsets = [0, 0], sizes = [128, 16], strides = [1, 1]} : vector<128x20xf32> to vector<128x16xf32>
    %4 = arith.truncf %3 : vector<128x16xf32> to vector<128x16xbf16>
    %c0_3 = arith.constant 0 : index
    %c0_4 = arith.constant 0 : index
    %5 = vector.load %arg3[%c0_3, %c0_4] : memref<128x16xbf16, #tpu.memory_space<vmem>>, vector<128x16xbf16>
    tpu.vector_store %arg3[%c0_3, %c0_4], %4 {strides = array<i32>} : memref<128x16xbf16, #tpu.memory_space<vmem>>, vector<128x16xbf16>,
    %6 = vector.extract_strided_slice %2 {offsets = [0, 16], sizes = [128, 4], strides = [1, 1]} : vector<128x20xf32> to vector<128x4xf32>
    %c0_5 = arith.constant 0 : index
    %c0_6 = arith.constant 0 : index
    %7 = vector.load %arg4[%c0_5, %c0_6] : memref<128x4xf32, #tpu.memory_space<vmem>>, vector<128x4xf32>
    tpu.vector_store %arg4[%c0_5, %c0_6], %6 {strides = array<i32>} : memref<128x4xf32, #tpu.memory_space<vmem>>, vector<128x4xf32>,
    return
  }
  func.func @transform_0(%arg0: i32) -> (i32, i32) {
    %c0_i32 = arith.constant 0 : i32
    %c0_i32_0 = arith.constant 0 : i32
    return %arg0, %c0_i32 : i32, i32
  }
  func.func @transform_1(%arg0: i32) -> (i32, i32) {
    %c0_i32 = arith.constant 0 : i32
    %c0_i32_0 = arith.constant 0 : i32
    %c0_i32_1 = arith.constant 0 : i32
    return %c0_i32, %c0_i32_0 : i32, i32
  }
  func.func @transform_2(%arg0: i32) -> (i32, i32) {
    %c0_i32 = arith.constant 0 : i32
    %c0_i32_0 = arith.constant 0 : i32
    return %arg0, %c0_i32 : i32, i32
  }
  func.func @transform_3(%arg0: i32) -> (i32, i32) {
    %c0_i32 = arith.constant 0 : i32
    %c0_i32_0 = arith.constant 0 : i32
    return %arg0, %c0_i32 : i32, i32
  }
}

</mosaic_0001>

<llo_original>
// kernel: tpu_custom_call.1
$region0: #{tpu_custom_call.1}
  #allocation0 [shape = 'u32[]', space=smem, size = 0x4, offset = 0x4, fixed_abs, tag = 'smem constant byte address 0x4 - core index']
  #allocation1 [shape = 'u32[144,128]{1,0:T(1,128)}', space=vmem, size = 0x12000, scoped, tag = 'internal scratch']
  %s0 = inlined_call_operand.vmem [shape: f32[128,8], index: 0, kind: input, shape index: {}]
  %s1 = inlined_call_operand.vmem [shape: f32[8,20], index: 1, kind: input, shape index: {}]
  %s2 = inlined_call_operand.vmem [shape: bf16[128,16], index: 2, kind: output, shape index: {0}]
  %s3 = inlined_call_operand.vmem [shape: f32[128,4], index: 3, kind: output, shape index: {1}]
  %4 = xla_tuple %s2, %s3
  %s5 = sld [smem:[#allocation0]]
  $region26: #{tpu_custom_call.1} parent=0
    _
  %s7 = ssub.s32 1, %s5
  %s8 = scalar_select 0, %s7, %s5
  // Predicated region
  $region2: #{tpu_custom_call.1} parent=0 // pred_check
    _
  $region3: #{tpu_custom_call.1} parent=0 // pred_check_branch
    %10 = sbr.rel (0) target = $region5
  $region4: #{tpu_custom_call.1} parent=0 // pred_region
    _
  $region5: #{tpu_custom_call.1} parent=0 // pred_fallthru
    _
  // Predicated region
  $region6: #{tpu_custom_call.1} parent=0 // pred_check
    _
  $region7: #{tpu_custom_call.1} parent=0 // pred_check_branch
    %12 = sbr.rel (0) target = $region9
  $region8: #{tpu_custom_call.1} parent=0 // pred_region
    _
  $region9: #{tpu_custom_call.1} parent=0 // pred_fallthru
    _
  %v13 = vld [vmem:[%s0] sm:$0xff]
  %v14 = vld [vmem:[%s0 + $0x8] sm:$0xff]
  %v15 = vld [vmem:[%s0 + $0x10] sm:$0xff]
  %v16 = vld [vmem:[%s0 + $0x18] sm:$0xff]
  %v17 = vld [vmem:[%s0 + $0x20] sm:$0xff]
  %v18 = vld [vmem:[%s0 + $0x28] sm:$0xff]
  %v19 = vld [vmem:[%s0 + $0x30] sm:$0xff]
  %v20 = vld [vmem:[%s0 + $0x38] sm:$0xff]
  %v21 = vld [vmem:[%s0 + $0x40] sm:$0xff]
  %v22 = vld [vmem:[%s0 + $0x48] sm:$0xff]
  %v23 = vld [vmem:[%s0 + $0x50] sm:$0xff]
  %v24 = vld [vmem:[%s0 + $0x58] sm:$0xff]
  %v25 = vld [vmem:[%s0 + $0x60] sm:$0xff]
  %v26 = vld [vmem:[%s0 + $0x68] sm:$0xff]
  %v27 = vld [vmem:[%s0 + $0x70] sm:$0xff]
  %v28 = vld [vmem:[%s0 + $0x78] sm:$0xff]
  %v29 = vld [vmem:[%s1] sm:$0xff]
  %vm30 = vcmask 64512
  %v32 = vsel %vm30, %v13, 0
  %v35 = vsel %vm30, %v14, 0
  %v38 = vsel %vm30, %v15, 0
  %v41 = vsel %vm30, %v16, 0
  %v44 = vsel %vm30, %v17, 0
  %v47 = vsel %vm30, %v18, 0
  %v50 = vsel %vm30, %v19, 0
  %v53 = vsel %vm30, %v20, 0
  %v56 = vsel %vm30, %v21, 0
  %v59 = vsel %vm30, %v22, 0
  %v62 = vsel %vm30, %v23, 0
  %v65 = vsel %vm30, %v24, 0
  %v68 = vsel %vm30, %v25, 0
  %v71 = vsel %vm30, %v26, 0
  %v74 = vsel %vm30, %v27, 0
  %v77 = vsel %vm30, %v28, 0
  %79 = vmatprep.subr.mxu0 0.0
  %80 = vmatpush1.msra.mxu0 0.0
  %81 = vmatprep.subr.mxu0 0.0
  %82 = vmatpush1.msra.mxu0 0.0
  %83 = vmatprep.subr.mxu0 0.0
  %84 = vmatpush1.msra.mxu0 0.0
  %85 = vmatprep.subr.mxu0 0.0
  %86 = vmatpush1.msra.mxu0 0.0
  %87 = vmatprep.subr.mxu0 0.0
  %88 = vmatpush1.msra.mxu0 0.0
  %89 = vmatprep.subr.mxu0 0.0
  %90 = vmatpush1.msra.mxu0 0.0
  %91 = vmatprep.subr.mxu0 0.0
  %92 = vmatpush1.msra.mxu0 0.0
  %93 = vmatprep.subr.mxu0 0.0
  %94 = vmatpush1.msra.mxu0 0.0
  %95 = vmatprep.subr.mxu0 0.0
  %96 = vmatpush1.msra.mxu0 0.0
  %97 = vmatprep.subr.mxu0 0.0
  %98 = vmatpush1.msra.mxu0 0.0
  %99 = vmatprep.subr.mxu0 0.0
  %100 = vmatpush1.msra.mxu0 0.0
  %101 = vmatprep.subr.mxu0 0.0
  %102 = vmatpush1.msra.mxu0 0.0
  %103 = vmatprep.subr.mxu0 0.0
  %104 = vmatpush1.msra.mxu0 0.0
  %105 = vmatprep.subr.mxu0 0.0
  %106 = vmatpush1.msra.mxu0 0.0
  %107 = vmatprep.subr.mxu0 0.0
  %108 = vmatpush1.msra.mxu0 0.0
  %109 = vmatprep.subr.mxu0 0.0
  %110 = vmatpush1.msra.mxu0 %v29
  %111 = vmatprep.subr.mxu0 0.0
  %112 = vmatpush2.msra.mxu0 0.0
  %113 = vmatprep.subr.mxu0 0.0
  %114 = vmatpush2.msra.mxu0 0.0
  %115 = vmatprep.subr.mxu0 0.0
  %116 = vmatpush2.msra.mxu0 0.0
  %117 = vmatprep.subr.mxu0 0.0
  %118 = vmatpush2.msra.mxu0 0.0
  %119 = vmatprep.subr.mxu0 0.0
  %120 = vmatpush2.msra.mxu0 0.0
  %121 = vmatprep.subr.mxu0 0.0
  %122 = vmatpush2.msra.mxu0 0.0
  %123 = vmatprep.subr.mxu0 0.0
  %124 = vmatpush2.msra.mxu0 0.0
  %125 = vmatprep.subr.mxu0 0.0
  %126 = vmatpush2.msra.mxu0 0.0
  %127 = vmatprep.subr.mxu0 0.0
  %128 = vmatpush2.msra.mxu0 0.0
  %129 = vmatprep.subr.mxu0 0.0
  %130 = vmatpush2.msra.mxu0 0.0
  %131 = vmatprep.subr.mxu0 0.0
  %132 = vmatpush2.msra.mxu0 0.0
  %133 = vmatprep.subr.mxu0 0.0
  %134 = vmatpush2.msra.mxu0 0.0
  %135 = vmatprep.subr.mxu0 0.0
  %136 = vmatpush2.msra.mxu0 0.0
  %137 = vmatprep.subr.mxu0 0.0
  %138 = vmatpush2.msra.mxu0 0.0
  %139 = vmatprep.subr.mxu0 0.0
  %140 = vmatpush2.msra.mxu0 0.0
  %141 = vmatprep.subr.mxu0 0.0
  %142 = vmatpush2.msra.mxu0 0.0
  %143 = vmatprep.mubr.f32.mxu0 0.0
  %144 = vmatmul.mubr.f32.gmra.mxu0 %v32
  %v145 = vpop.f32.mrf.mxu0
  %v146 = vadd.f32 0.0, %v145
  %v147 = vpop.f32.mrf.mxu0
  %148 = vmatprep.mubr.f32.mxu0 0.0
  %149 = vmatmul.mubr.f32.gmra.mxu0 %v35
  %v150 = vpop.f32.mrf.mxu0
  %v151 = vadd.f32 0.0, %v150
  %v152 = vpop.f32.mrf.mxu0
  %153 = vmatprep.mubr.f32.mxu0 0.0
  %154 = vmatmul.mubr.f32.gmra.mxu0 %v38
  %v155 = vpop.f32.mrf.mxu0
  %v156 = vadd.f32 0.0, %v155
  %v157 = vpop.f32.mrf.mxu0
  %158 = vmatprep.mubr.f32.mxu0 0.0
  %159 = vmatmul.mubr.f32.gmra.mxu0 %v41
  %v160 = vpop.f32.mrf.mxu0
  %v161 = vadd.f32 0.0, %v160
  %v162 = vpop.f32.mrf.mxu0
  %163 = vmatprep.mubr.f32.mxu0 0.0
  %164 = vmatmul.mubr.f32.gmra.mxu0 %v44
  %v165 = vpop.f32.mrf.mxu0
  %v166 = vadd.f32 0.0, %v165
  %v167 = vpop.f32.mrf.mxu0
  %168 = vmatprep.mubr.f32.mxu0 0.0
  %169 = vmatmul.mubr.f32.gmra.mxu0 %v47
  %v170 = vpop.f32.mrf.mxu0
  %v171 = vadd.f32 0.0, %v170
  %v172 = vpop.f32.mrf.mxu0
  %173 = vmatprep.mubr.f32.mxu0 0.0
  %174 = vmatmul.mubr.f32.gmra.mxu0 %v50
  %v175 = vpop.f32.mrf.mxu0
  %v176 = vadd.f32 0.0, %v175
  %v177 = vpop.f32.mrf.mxu0
  %178 = vmatprep.mubr.f32.mxu0 0.0
  %179 = vmatmul.mubr.f32.gmra.mxu0 %v53
  %v180 = vpop.f32.mrf.mxu0
  %v181 = vadd.f32 0.0, %v180
  %v182 = vpop.f32.mrf.mxu0
  %183 = vmatprep.mubr.f32.mxu0 0.0
  %184 = vmatmul.mubr.f32.gmra.mxu0 %v56
  %v185 = vpop.f32.mrf.mxu0
  %v186 = vadd.f32 0.0, %v185
  %v187 = vpop.f32.mrf.mxu0
  %188 = vmatprep.mubr.f32.mxu0 0.0
  %189 = vmatmul.mubr.f32.gmra.mxu0 %v59
  %v190 = vpop.f32.mrf.mxu0
  %v191 = vadd.f32 0.0, %v190
  %v192 = vpop.f32.mrf.mxu0
  %193 = vmatprep.mubr.f32.mxu0 0.0
  %194 = vmatmul.mubr.f32.gmra.mxu0 %v62
  %v195 = vpop.f32.mrf.mxu0
  %v196 = vadd.f32 0.0, %v195
  %v197 = vpop.f32.mrf.mxu0
  %198 = vmatprep.mubr.f32.mxu0 0.0
  %199 = vmatmul.mubr.f32.gmra.mxu0 %v65
  %v200 = vpop.f32.mrf.mxu0
  %v201 = vadd.f32 0.0, %v200
  %v202 = vpop.f32.mrf.mxu0
  %203 = vmatprep.mubr.f32.mxu0 0.0
  %204 = vmatmul.mubr.f32.gmra.mxu0 %v68
  %v205 = vpop.f32.mrf.mxu0
  %v206 = vadd.f32 0.0, %v205
  %v207 = vpop.f32.mrf.mxu0
  %208 = vmatprep.mubr.f32.mxu0 0.0
  %209 = vmatmul.mubr.f32.gmra.mxu0 %v71
  %v210 = vpop.f32.mrf.mxu0
  %v211 = vadd.f32 0.0, %v210
  %v212 = vpop.f32.mrf.mxu0
  %213 = vmatprep.mubr.f32.mxu0 0.0
  %214 = vmatmul.mubr.f32.gmra.mxu0 %v74
  %v215 = vpop.f32.mrf.mxu0
  %v216 = vadd.f32 0.0, %v215
  %v217 = vpop.f32.mrf.mxu0
  %218 = vmatprep.mubr.f32.mxu0 0.0
  %219 = vmatmul.mubr.f32.gmra.mxu0 %v77
  %v220 = vpop.f32.mrf.mxu0
  %v221 = vadd.f32 0.0, %v220
  %v222 = vpop.f32.mrf.mxu0
  %223 = vdwg.mxu0
  %v224 = vpack.c.bf16 %v151, %v146
  %v225 = vpack.c.bf16 %v161, %v156
  %v226 = vpack.c.bf16 %v171, %v166
  %v227 = vpack.c.bf16 %v181, %v176
  %v228 = vpack.c.bf16 %v191, %v186
  %v229 = vpack.c.bf16 %v201, %v196
  %v230 = vpack.c.bf16 %v211, %v206
  %v231 = vpack.c.bf16 %v221, %v216
  %v240 = vunpack.c.l.b16 %v224
  %v241 = vunpack.c.h.b16 %v224
  %v242 = vunpack.c.l.b16 %v225
  %v243 = vunpack.c.h.b16 %v225
  %v244 = vunpack.c.l.b16 %v226
  %v245 = vunpack.c.h.b16 %v226
  %v246 = vunpack.c.l.b16 %v227
  %v247 = vunpack.c.h.b16 %v227
  %v248 = vunpack.c.l.b16 %v228
  %v249 = vunpack.c.h.b16 %v228
  %v250 = vunpack.c.l.b16 %v229
  %v251 = vunpack.c.h.b16 %v229
  %v252 = vunpack.c.l.b16 %v230
  %v253 = vunpack.c.h.b16 %v230
  %v254 = vunpack.c.l.b16 %v231
  %v255 = vunpack.c.h.b16 %v231
  %v256 = vpack.c.b16 %v240, %v240
  %v257 = vpack.c.b16 %v241, %v241
  %v258 = vpack.c.b16 %v242, %v242
  %v259 = vpack.c.b16 %v243, %v243
  %v260 = vpack.c.b16 %v244, %v244
  %v261 = vpack.c.b16 %v245, %v245
  %v262 = vpack.c.b16 %v246, %v246
  %v263 = vpack.c.b16 %v247, %v247
  %v264 = vpack.c.b16 %v248, %v248
  %v265 = vpack.c.b16 %v249, %v249
  %v266 = vpack.c.b16 %v250, %v250
  %v267 = vpack.c.b16 %v251, %v251
  %v268 = vpack.c.b16 %v252, %v252
  %v269 = vpack.c.b16 %v253, %v253
  %v270 = vpack.c.b16 %v254, %v254
  %v271 = vpack.c.b16 %v255, %v255
  %vm288 = vcmask 125952
  %289 = vst.msk [vmem:[%s2] sm:$0xf] %vm288, %v256
  %290 = vst.msk [vmem:[%s2 + $0x4] sm:$0xf] %vm288, %v257
  %291 = vst.msk [vmem:[%s2 + $0x8] sm:$0xf] %vm288, %v258
  %292 = vst.msk [vmem:[%s2 + $0xc] sm:$0xf] %vm288, %v259
  %293 = vst.msk [vmem:[%s2 + $0x10] sm:$0xf] %vm288, %v260
  %294 = vst.msk [vmem:[%s2 + $0x14] sm:$0xf] %vm288, %v261
  %295 = vst.msk [vmem:[%s2 + $0x18] sm:$0xf] %vm288, %v262
  %296 = vst.msk [vmem:[%s2 + $0x1c] sm:$0xf] %vm288, %v263
  %297 = vst.msk [vmem:[%s2 + $0x20] sm:$0xf] %vm288, %v264
  %298 = vst.msk [vmem:[%s2 + $0x24] sm:$0xf] %vm288, %v265
  %299 = vst.msk [vmem:[%s2 + $0x28] sm:$0xf] %vm288, %v266
  %300 = vst.msk [vmem:[%s2 + $0x2c] sm:$0xf] %vm288, %v267
  %301 = vst.msk [vmem:[%s2 + $0x30] sm:$0xf] %vm288, %v268
  %302 = vst.msk [vmem:[%s2 + $0x34] sm:$0xf] %vm288, %v269
  %303 = vst.msk [vmem:[%s2 + $0x38] sm:$0xf] %vm288, %v270
  %304 = vst.msk [vmem:[%s2 + $0x3c] sm:$0xf] %vm288, %v271
  %321 = vrot.lane.b32.xlu0 %v146, 112
  %v322 = vpop.permute.xlu0 %321
  %323 = vrot.lane.b32.xlu0 %v151, 112
  %v324 = vpop.permute.xlu0 %323
  %325 = vrot.lane.b32.xlu0 %v156, 112
  %v326 = vpop.permute.xlu0 %325
  %327 = vrot.lane.b32.xlu0 %v161, 112
  %v328 = vpop.permute.xlu0 %327
  %329 = vrot.lane.b32.xlu0 %v166, 112
  %v330 = vpop.permute.xlu0 %329
  %331 = vrot.lane.b32.xlu0 %v171, 112
  %v332 = vpop.permute.xlu0 %331
  %333 = vrot.lane.b32.xlu0 %v176, 112
  %v334 = vpop.permute.xlu0 %333
  %335 = vrot.lane.b32.xlu0 %v181, 112
  %v336 = vpop.permute.xlu0 %335
  %337 = vrot.lane.b32.xlu0 %v186, 112
  %v338 = vpop.permute.xlu0 %337
  %339 = vrot.lane.b32.xlu0 %v191, 112
  %v340 = vpop.permute.xlu0 %339
  %341 = vrot.lane.b32.xlu0 %v196, 112
  %v342 = vpop.permute.xlu0 %341
  %343 = vrot.lane.b32.xlu0 %v201, 112
  %v344 = vpop.permute.xlu0 %343
  %345 = vrot.lane.b32.xlu0 %v206, 112
  %v346 = vpop.permute.xlu0 %345
  %347 = vrot.lane.b32.xlu0 %v211, 112
  %v348 = vpop.permute.xlu0 %347
  %349 = vrot.lane.b32.xlu0 %v216, 112
  %v350 = vpop.permute.xlu0 %349
  %351 = vrot.lane.b32.xlu0 %v221, 112
  %v352 = vpop.permute.xlu0 %351
  %vm369 = vcmask 31744
  %370 = vst.msk [vmem:[%s3] sm:$0xff] %vm369, %v322
  %371 = vst.msk [vmem:[%s3 + $0x8] sm:$0xff] %vm369, %v324
  %372 = vst.msk [vmem:[%s3 + $0x10] sm:$0xff] %vm369, %v326
  %373 = vst.msk [vmem:[%s3 + $0x18] sm:$0xff] %vm369, %v328
  %374 = vst.msk [vmem:[%s3 + $0x20] sm:$0xff] %vm369, %v330
  %375 = vst.msk [vmem:[%s3 + $0x28] sm:$0xff] %vm369, %v332
  %376 = vst.msk [vmem:[%s3 + $0x30] sm:$0xff] %vm369, %v334
  %377 = vst.msk [vmem:[%s3 + $0x38] sm:$0xff] %vm369, %v336
  %378 = vst.msk [vmem:[%s3 + $0x40] sm:$0xff] %vm369, %v338
  %379 = vst.msk [vmem:[%s3 + $0x48] sm:$0xff] %vm369, %v340
  %380 = vst.msk [vmem:[%s3 + $0x50] sm:$0xff] %vm369, %v342
  %381 = vst.msk [vmem:[%s3 + $0x58] sm:$0xff] %vm369, %v344
  %382 = vst.msk [vmem:[%s3 + $0x60] sm:$0xff] %vm369, %v346
  %383 = vst.msk [vmem:[%s3 + $0x68] sm:$0xff] %vm369, %v348
  %384 = vst.msk [vmem:[%s3 + $0x70] sm:$0xff] %vm369, %v350
  %385 = vst.msk [vmem:[%s3 + $0x78] sm:$0xff] %vm369, %v352
  // Predicated region
  $region10: #{tpu_custom_call.1} parent=0 // pred_check
    _
  $region11: #{tpu_custom_call.1} parent=0 // pred_check_branch
    %387 = sbr.rel (0) target = $region13
  $region12: #{tpu_custom_call.1} parent=0 // pred_region
    _
  $region13: #{tpu_custom_call.1} parent=0 // pred_fallthru
    _
  // Predicated region
  $region14: #{tpu_custom_call.1} parent=0 // pred_check
    _
  $region15: #{tpu_custom_call.1} parent=0 // pred_check_branch
    %389 = sbr.rel (0) target = $region17
  $region16: #{tpu_custom_call.1} parent=0 // pred_region
    _
  $region17: #{tpu_custom_call.1} parent=0 // pred_fallthru
    _
  // Predicated region
  $region18: #{tpu_custom_call.1} parent=0 // pred_check
    _
  $region19: #{tpu_custom_call.1} parent=0 // pred_check_branch
    %391 = sbr.rel (0) target = $region21
  $region20: #{tpu_custom_call.1} parent=0 // pred_region
    _
  $region21: #{tpu_custom_call.1} parent=0 // pred_fallthru
    _
  // Predicated region
  $region22: #{tpu_custom_call.1} parent=0 // pred_check
    _
  $region23: #{tpu_custom_call.1} parent=0 // pred_check_branch
    %393 = sbr.rel (0) target = $region25
  $region24: #{tpu_custom_call.1} parent=0 // pred_region
    _
  $region25: #{tpu_custom_call.1} parent=0 // pred_fallthru
    _

</llo_original>
